<compile_context>
chip_gen: v5e
topology: v5e:2x2
jax: 0.10.0
libtpu: 0.0.40
codegen_flags: <defaults>
</compile_context>

<pallas_src>
import functools

import jax
import jax.numpy as jnp
from jax.experimental import pallas as pl
from jax.experimental.pallas import tpu as pltpu


# ---------------------------------------------------------------------------
# Kernels
# ---------------------------------------------------------------------------

def _kernel_fused_w2(x_ref, eps_ref, w1_ref, b1_ref, w2_ref, b2_ref,
                     z_ref, mu_ref, lv_ref, *, out_dim):
    """Fused first layer [mean|var]; second layer as one block-diag matmul."""
    cd = w1_ref.dtype                                   # MXU operand dtype
    x = x_ref[...].astype(cd)
    # Layer 1 (fused): one wide MXU pass instead of two narrow ones.
    h = jnp.dot(x, w1_ref[...], preferred_element_type=jnp.float32) + b1_ref[...]
    h = jnp.maximum(h, 0.0).astype(cd)
    # Layer 2 (block-diagonal): [mu | logvar] in one MXU pass.
    mv = jnp.dot(h, w2_ref[...], preferred_element_type=jnp.float32) + b2_ref[...]
    mu = mv[:, :out_dim]
    logvar = mv[:, out_dim:]
    std = jnp.exp(0.5 * logvar)                         # EUP
    z = eps_ref[...].astype(jnp.float32) * std + mu     # VPU
    z_ref[...] = z.astype(z_ref.dtype)
    mu_ref[...] = mu.astype(mu_ref.dtype)
    lv_ref[...] = logvar.astype(lv_ref.dtype)


def _kernel_split_w2(x_ref, eps_ref, w1_ref, b1_ref, wm2_ref, wv2_ref, b2_ref,
                     z_ref, mu_ref, lv_ref, *, out_dim, hidden_m):
    """Fused first layer; second layer as two matmuls (2H too wide to fuse)."""
    cd = w1_ref.dtype
    x = x_ref[...].astype(cd)
    h = jnp.dot(x, w1_ref[...], preferred_element_type=jnp.float32) + b1_ref[...]
    h = jnp.maximum(h, 0.0).astype(cd)
    mu = (jnp.dot(h[:, :hidden_m], wm2_ref[...],
                  preferred_element_type=jnp.float32) + b2_ref[:, :out_dim])
    logvar = (jnp.dot(h[:, hidden_m:], wv2_ref[...],
                      preferred_element_type=jnp.float32) + b2_ref[:, out_dim:])
    std = jnp.exp(0.5 * logvar)
    z = eps_ref[...].astype(jnp.float32) * std + mu
    z_ref[...] = z.astype(z_ref.dtype)
    mu_ref[...] = mu.astype(mu_ref.dtype)
    lv_ref[...] = logvar.astype(lv_ref.dtype)


# ---------------------------------------------------------------------------
# Wrapper
# ---------------------------------------------------------------------------

# Only zero-pad W2 into a block-diagonal while 2H fits one MXU pass; past that
# the zero half costs real DMA bytes, VMEM residency and vmatmul pushes.
# (256 for v6e/v7x MXUs; use 128 when targeting v5e.)
_FUSED_W2_MAX_COLS = 256


def prepare_params(params, compute_dtype=jnp.float32, *, fuse_w2=None):
    """One-time fusion of the two MLP branches.  Call at init, NOT per forward.

    params: wm1 (D,Hm), bm1 (1,Hm), wm2 (Hm,O), bm2 (1,O),
            wv1 (D,Hv), bv1 (1,Hv), wv2 (Hv,O), bv2 (1,O)
    compute_dtype: dtype of the MXU operands (weights + x).  bf16 halves the
            weight stream and uses the bf16-native MXU path; accumulation,
            biases, exp and z stay f32.
    """
    Hm = params["wm1"].shape[1]
    Hv = params["wv1"].shape[1]
    O = params["wm2"].shape[1]
    cd = compute_dtype

    w1 = jnp.concatenate([params["wm1"], params["wv1"]], axis=1).astype(cd)   # (D, Hm+Hv)
    b1 = jnp.concatenate([params["bm1"], params["bv1"]], axis=1).astype(jnp.float32)
    b2 = jnp.concatenate([params["bm2"], params["bv2"]], axis=1).astype(jnp.float32)  # (1, 2O)

    if fuse_w2 is None:
        fuse_w2 = (Hm + Hv) <= _FUSED_W2_MAX_COLS

    prep = dict(w1=w1, b1=b1, b2=b2, hm=Hm, out_dim=O, fuse_w2=bool(fuse_w2))
    if fuse_w2:
        w2 = jnp.zeros((Hm + Hv, 2 * O), jnp.float32)
        w2 = w2.at[:Hm, :O].set(params["wm2"]).at[Hm:, O:].set(params["wv2"])
        prep["w2"] = w2.astype(cd)
    else:
        prep["wm2"] = params["wm2"].astype(cd)
        prep["wv2"] = params["wv2"].astype(cd)
    return prep


def _pick_block_b(B, d_in, out_dim):
    """Default batch tile.

    * B <= 256: single tile (per-grid-step overhead ~0.35us dominates here).
    * B  > 256: >= 256 rows and >= 2 grid steps, so the "parallel" batch axis
      can shard across v7x's two TensorCores.
    * Capped so the double-buffered activation tiles stay well inside v5e's
      16 MiB scoped-VMEM default (so no vmem_limit_bytes override is needed).
    """
    budget = 8 * 1024 * 1024                       # conservative activation budget
    row_bytes = 2 * 4 * (d_in + 4 * out_dim)       # 2 buffers x f32 x (x + eps + 3 outs)
    cap = max(8, (budget // max(row_bytes, 1)) // 8 * 8)
    tile = B if B <= 256 else max(256, -(-B // 2))
    tile = min(tile, cap)
    if tile >= B:
        return B
    return max(8, tile // 8 * 8)


def normal_distr_generator(x, prep, key=None, *, eps=None, block_b=None):
    """NormalDistrGenerator forward as one fused Pallas kernel.

    Args:
      x:       (B, D) input.
      prep:    output of prepare_params().
      key:     jax PRNG key for the fresh eps ~ N(0,1) draw (used if eps is None).
      eps:     optional (B, O) standard-normal noise.
      block_b: batch tile override (rounded to a multiple of 8).

    Returns:
      (z, {'mean': mu, 'logstd': logvar})   # 'logstd' holds log-variance,
                                            # matching the PyTorch reference.
    """
    B, D = x.shape
    O = prep["out_dim"]

    if eps is None:
        if key is None:
            key = jax.random.PRNGKey(0)
        eps = jax.random.normal(key, (B, O), jnp.float32)

    if block_b is None:
        block_b = _pick_block_b(B, D, O)
    else:
        block_b = min(max(int(block_b), 8), B)
        if block_b != B:
            block_b = block_b // 8 * 8
    grid = (pl.cdiv(B, block_b),)

    # Activations tile along batch; weights use a constant index_map so they
    # stay VMEM-resident across grid steps.
    tiled = lambda n: pl.BlockSpec((block_b, n), lambda i: (i, 0))
    resident = lambda a: pl.BlockSpec(a.shape, lambda i: (0, 0))
    out_spec = pl.BlockSpec((block_b, O), lambda i: (i, 0))

    if prep["fuse_w2"]:
        kernel = functools.partial(_kernel_fused_w2, out_dim=O)
        weights = (prep["w1"], prep["b1"], prep["w2"], prep["b2"])
    else:
        kernel = functools.partial(_kernel_split_w2, out_dim=O, hidden_m=prep["hm"])
        weights = (prep["w1"], prep["b1"], prep["wm2"], prep["wv2"], prep["b2"])

    out_sds = jax.ShapeDtypeStruct((B, O), jnp.float32)
    z, mu, logvar = pl.pallas_call(
        kernel,
        grid_spec=pltpu.PrefetchScalarGridSpec(
            num_scalar_prefetch=0,
            grid=grid,
            in_specs=[tiled(D), tiled(O)] + [resident(w) for w in weights],
            out_specs=[out_spec, out_spec, out_spec]),
        out_shape=(out_sds, out_sds, out_sds),
        compiler_params=pltpu.CompilerParams(
            dimension_semantics=("parallel",)),
    )(x, eps, *weights)

    # NOTE: with O < 128 (demo) the three output blocks are narrower than a
    # lane group -> masked stores; real configs should use O as a multiple of
    # 128 for lane-dense unmasked stores.
    return z, {"mean": mu, "logstd": logvar}


# ---------------------------------------------------------------------------
# Synthetic init (mirrors the two single-hidden-layer PyTorch MLPs)
# ---------------------------------------------------------------------------

def init_params(key, input_dim, mean_layers_dim, mean_output_dim, var_layers_dim):
    assert len(mean_layers_dim) == 1 and len(var_layers_dim) == 1
    Hm, Hv = mean_layers_dim[0], var_layers_dim[0]
    ks = jax.random.split(key, 8)

    def lin(kw, kb, fan_in, fan_out):
        bound = 1.0 / jnp.sqrt(fan_in)
        w = jax.random.uniform(kw, (fan_in, fan_out), jnp.float32, -bound, bound)
        b = jax.random.uniform(kb, (1, fan_out), jnp.float32, -bound, bound)
        return w, b

    wm1, bm1 = lin(ks[0], ks[1], input_dim, Hm)
    wm2, bm2 = lin(ks[2], ks[3], Hm, mean_output_dim)
    wv1, bv1 = lin(ks[4], ks[5], input_dim, Hv)
    wv2, bv2 = lin(ks[6], ks[7], Hv, mean_output_dim)
    return dict(wm1=wm1, bm1=bm1, wm2=wm2, bm2=bm2,
                wv1=wv1, bv1=bv1, wv2=wv2, bv2=bv2)


if __name__ == "__main__":
    key = jax.random.PRNGKey(0)
    k_param, k_x, k_eps = jax.random.split(key, 3)

    # Small shapes, but B=512 so the default tile (256 rows) gives grid=(2,):
    # exercises pipelining, resident weights, and lets the "parallel" batch
    # axis use both TensorCores on v7x.
    B, D, H, O = 512, 32, 32, 16
    raw = init_params(k_param, input_dim=D, mean_layers_dim=[H],
                      mean_output_dim=O, var_layers_dim=[H])
    x = jax.random.normal(k_x, (B, D), jnp.float32)

    # One-time branch fusion (f32 path).
    prep = prepare_params(raw)

    # --- run with an explicit eps so z can be checked deterministically ---
    eps = jax.random.normal(k_eps, (B, O), jnp.float32)
    z, stats = normal_distr_generator(x, prep, eps=eps)
    jax.block_until_ready((z, stats))

    # Plain-JAX reference (HIGHEST precision so XLA's default bf16-pass matmul
    # doesn't pollute the comparison).
    hi = jax.lax.Precision.HIGHEST
    h_m = jnp.maximum(jnp.dot(x, raw["wm1"], precision=hi) + raw["bm1"], 0.0)
    mu_ref = jnp.dot(h_m, raw["wm2"], precision=hi) + raw["bm2"]
    h_v = jnp.maximum(jnp.dot(x, raw["wv1"], precision=hi) + raw["bv1"], 0.0)
    lv_ref = jnp.dot(h_v, raw["wv2"], precision=hi) + raw["bv2"]
    z_ref = eps * jnp.exp(0.5 * lv_ref) + mu_ref

    # Tolerances cover MXU default-precision differences between backends.
    assert jnp.allclose(stats["mean"], mu_ref, atol=2e-2), "mean mismatch"
    assert jnp.allclose(stats["logstd"], lv_ref, atol=2e-2), "logvar mismatch"
    assert jnp.allclose(z, z_ref, atol=2e-2), "z mismatch"

    # --- fresh-draw path (key instead of eps): sanity-check noise statistics ---
    z2, stats2 = normal_distr_generator(x, prep, key=k_eps)
    jax.block_until_ready(z2)
    eps_hat = (z2 - stats2["mean"]) / jnp.exp(0.5 * stats2["logstd"])
    assert bool(jnp.all(jnp.isfinite(eps_hat))), "non-finite z"
    assert float(jnp.abs(jnp.mean(eps_hat))) < 0.1, "eps mean off"
    assert abs(float(jnp.std(eps_hat)) - 1.0) < 0.1, "eps std off"

    # --- non-fused second-layer path (used automatically when 2H > 256) ---
    prep_split = prepare_params(raw, fuse_w2=False)
    z_s, stats_s = normal_distr_generator(x, prep_split, eps=eps)
    jax.block_until_ready(z_s)
    assert jnp.allclose(stats_s["mean"], mu_ref, atol=2e-2), "split mean mismatch"
    assert jnp.allclose(stats_s["logstd"], lv_ref, atol=2e-2), "split logvar mismatch"

    # --- bf16 MXU operands (f32 accumulation): bandwidth/MXU win, looser check ---
    prep_bf16 = prepare_params(raw, compute_dtype=jnp.bfloat16)
    z_bf, stats_bf = normal_distr_generator(x, prep_bf16, eps=eps)
    jax.block_until_ready(z_bf)
    assert jnp.allclose(stats_bf["mean"], mu_ref, atol=6e-2), "bf16 mean mismatch"
    assert jnp.allclose(stats_bf["logstd"], lv_ref, atol=6e-2), "bf16 logvar mismatch"

    print("KERNEL_OK")
</pallas_src>

<mosaic_0001>
module attributes {stable_mosaic.version = 11 : i64} {
  func.func @_kernel_fused_w2(%arg0: i32, %arg1: memref<256x32xf32, #tpu.memory_space<vmem>>, %arg2: memref<256x16xf32, #tpu.memory_space<vmem>>, %arg3: memref<32x64xf32, #tpu.memory_space<vmem>>, %arg4: memref<1x64xf32, #tpu.memory_space<vmem>>, %arg5: memref<64x32xf32, #tpu.memory_space<vmem>>, %arg6: memref<1x32xf32, #tpu.memory_space<vmem>>, %arg7: memref<256x16xf32, #tpu.memory_space<vmem>>, %arg8: memref<256x16xf32, #tpu.memory_space<vmem>>, %arg9: memref<256x16xf32, #tpu.memory_space<vmem>>) attributes {dimension_semantics = [#tpu.dimension_semantics<parallel>], iteration_bounds = array<i64: 2>, scalar_prefetch = 0 : i64, scratch_operands = 0 : i64, tpu.core_type = #tpu.core_type<tc>, window_params = [{transform_indices = @transform_0, window_bounds = array<i64: 256, 32>}, {transform_indices = @transform_1, window_bounds = array<i64: 256, 16>}, {pipeline_mode = #tpu.pipeline_mode<synchronous>, transform_indices = @transform_2, window_bounds = array<i64: 32, 64>}, {pipeline_mode = #tpu.pipeline_mode<synchronous>, transform_indices = @transform_3, window_bounds = array<i64: 1, 64>}, {pipeline_mode = #tpu.pipeline_mode<synchronous>, transform_indices = @transform_4, window_bounds = array<i64: 64, 32>}, {pipeline_mode = #tpu.pipeline_mode<synchronous>, transform_indices = @transform_5, window_bounds = array<i64: 1, 32>}, {transform_indices = @transform_6, window_bounds = array<i64: 256, 16>}, {transform_indices = @transform_7, window_bounds = array<i64: 256, 16>}, {transform_indices = @transform_8, window_bounds = array<i64: 256, 16>}]} {
    %c0 = arith.constant 0 : index
    %c0_0 = arith.constant 0 : index
    %0 = vector.load %arg1[%c0, %c0_0] : memref<256x32xf32, #tpu.memory_space<vmem>>, vector<256x32xf32>
    %c0_1 = arith.constant 0 : index
    %c0_2 = arith.constant 0 : index
    %1 = vector.load %arg3[%c0_1, %c0_2] : memref<32x64xf32, #tpu.memory_space<vmem>>, vector<32x64xf32>
    %cst = arith.constant dense<0.000000e+00> : vector<256x64xf32>
    %2 = tpu.matmul %0, %1, %cst {dimension_numbers = #tpu.dot_dimension_numbers<[1], [0], [0], [1], [0, 0, 1, 1], [], []>} : vector<256x32xf32>, vector<32x64xf32>, vector<256x64xf32> -> vector<256x64xf32>
    %c0_3 = arith.constant 0 : index
    %c0_4 = arith.constant 0 : index
    %3 = vector.load %arg4[%c0_3, %c0_4] : memref<1x64xf32, #tpu.memory_space<vmem>>, vector<1x64xf32>
    %4 = vector.broadcast %3 : vector<1x64xf32> to vector<256x64xf32>
    %5 = arith.addf %2, %4 : vector<256x64xf32>
    %cst_5 = arith.constant 0.000000e+00 : f32
    %6 = vector.broadcast %cst_5 : f32 to vector<256x64xf32>
    %7 = arith.maximumf %5, %6 : vector<256x64xf32>
    %c0_6 = arith.constant 0 : index
    %c0_7 = arith.constant 0 : index
    %8 = vector.load %arg5[%c0_6, %c0_7] : memref<64x32xf32, #tpu.memory_space<vmem>>, vector<64x32xf32>
    %cst_8 = arith.constant dense<0.000000e+00> : vector<256x32xf32>
    %9 = tpu.matmul %7, %8, %cst_8 {dimension_numbers = #tpu.dot_dimension_numbers<[1], [0], [0], [1], [0, 0, 1, 1], [], []>} : vector<256x64xf32>, vector<64x32xf32>, vector<256x32xf32> -> vector<256x32xf32>
    %c0_9 = arith.constant 0 : index
    %c0_10 = arith.constant 0 : index
    %10 = vector.load %arg6[%c0_9, %c0_10] : memref<1x32xf32, #tpu.memory_space<vmem>>, vector<1x32xf32>
    %11 = vector.broadcast %10 : vector<1x32xf32> to vector<256x32xf32>
    %12 = arith.addf %9, %11 : vector<256x32xf32>
    %13 = vector.extract_strided_slice %12 {offsets = [0, 0], sizes = [256, 16], strides = [1, 1]} : vector<256x32xf32> to vector<256x16xf32>
    %14 = vector.extract_strided_slice %12 {offsets = [0, 16], sizes = [256, 16], strides = [1, 1]} : vector<256x32xf32> to vector<256x16xf32>
    %cst_11 = arith.constant 5.000000e-01 : f32
    %15 = vector.broadcast %cst_11 : f32 to vector<256x16xf32>
    %16 = arith.mulf %15, %14 : vector<256x16xf32>
    %17 = math.exp %16 : vector<256x16xf32>
    %c0_12 = arith.constant 0 : index
    %c0_13 = arith.constant 0 : index
    %18 = vector.load %arg2[%c0_12, %c0_13] : memref<256x16xf32, #tpu.memory_space<vmem>>, vector<256x16xf32>
    %19 = arith.mulf %18, %17 : vector<256x16xf32>
    %20 = arith.addf %19, %13 : vector<256x16xf32>
    %c0_14 = arith.constant 0 : index
    %c0_15 = arith.constant 0 : index
    %21 = vector.load %arg7[%c0_14, %c0_15] : memref<256x16xf32, #tpu.memory_space<vmem>>, vector<256x16xf32>
    tpu.vector_store %arg7[%c0_14, %c0_15], %20 {strides = array<i32>} : memref<256x16xf32, #tpu.memory_space<vmem>>, vector<256x16xf32>,
    %c0_16 = arith.constant 0 : index
    %c0_17 = arith.constant 0 : index
    %22 = vector.load %arg8[%c0_16, %c0_17] : memref<256x16xf32, #tpu.memory_space<vmem>>, vector<256x16xf32>
    tpu.vector_store %arg8[%c0_16, %c0_17], %13 {strides = array<i32>} : memref<256x16xf32, #tpu.memory_space<vmem>>, vector<256x16xf32>,
    %c0_18 = arith.constant 0 : index
    %c0_19 = arith.constant 0 : index
    %23 = vector.load %arg9[%c0_18, %c0_19] : memref<256x16xf32, #tpu.memory_space<vmem>>, vector<256x16xf32>
    tpu.vector_store %arg9[%c0_18, %c0_19], %14 {strides = array<i32>} : memref<256x16xf32, #tpu.memory_space<vmem>>, vector<256x16xf32>,
    return
  }
  func.func @transform_0(%arg0: i32) -> (i32, i32) {
    %c0_i32 = arith.constant 0 : i32
    %c0_i32_0 = arith.constant 0 : i32
    return %arg0, %c0_i32 : i32, i32
  }
  func.func @transform_1(%arg0: i32) -> (i32, i32) {
    %c0_i32 = arith.constant 0 : i32
    %c0_i32_0 = arith.constant 0 : i32
    return %arg0, %c0_i32 : i32, i32
  }
  func.func @transform_2(%arg0: i32) -> (i32, i32) {
    %c0_i32 = arith.constant 0 : i32
    %c0_i32_0 = arith.constant 0 : i32
    %c0_i32_1 = arith.constant 0 : i32
    return %c0_i32, %c0_i32_0 : i32, i32
  }
  func.func @transform_3(%arg0: i32) -> (i32, i32) {
    %c0_i32 = arith.constant 0 : i32
    %c0_i32_0 = arith.constant 0 : i32
    %c0_i32_1 = arith.constant 0 : i32
    return %c0_i32, %c0_i32_0 : i32, i32
  }
  func.func @transform_4(%arg0: i32) -> (i32, i32) {
    %c0_i32 = arith.constant 0 : i32
    %c0_i32_0 = arith.constant 0 : i32
    %c0_i32_1 = arith.constant 0 : i32
    return %c0_i32, %c0_i32_0 : i32, i32
  }
  func.func @transform_5(%arg0: i32) -> (i32, i32) {
    %c0_i32 = arith.constant 0 : i32
    %c0_i32_0 = arith.constant 0 : i32
    %c0_i32_1 = arith.constant 0 : i32
    return %c0_i32, %c0_i32_0 : i32, i32
  }
  func.func @transform_6(%arg0: i32) -> (i32, i32) {
    %c0_i32 = arith.constant 0 : i32
    %c0_i32_0 = arith.constant 0 : i32
    return %arg0, %c0_i32 : i32, i32
  }
  func.func @transform_7(%arg0: i32) -> (i32, i32) {
    %c0_i32 = arith.constant 0 : i32
    %c0_i32_0 = arith.constant 0 : i32
    return %arg0, %c0_i32 : i32, i32
  }
  func.func @transform_8(%arg0: i32) -> (i32, i32) {
    %c0_i32 = arith.constant 0 : i32
    %c0_i32_0 = arith.constant 0 : i32
    return %arg0, %c0_i32 : i32, i32
  }
}

</mosaic_0001>

<llo_original>
// kernel: tpu_custom_call.1
$region0: #{tpu_custom_call.1}
  #allocation0 [shape = 'u32[]', space=smem, size = 0x4, offset = 0x4, fixed_abs, tag = 'smem constant byte address 0x4 - core index']
  #allocation1 [shape = 'u32[72,128]{1,0:T(1,128)}', space=vmem, size = 0x9000, scoped, tag = 'internal scratch']
  %s0 = inlined_call_operand.vmem [shape: f32[512,32], index: 0, kind: input, shape index: {}]
  %s1 = inlined_call_operand.vmem [shape: f32[512,16], index: 1, kind: input, shape index: {}]
  %s2 = inlined_call_operand.vmem [shape: f32[32,64], index: 2, kind: input, shape index: {}]
  %s3 = inlined_call_operand.vmem [shape: f32[1,64], index: 3, kind: input, shape index: {}]
  %s4 = inlined_call_operand.vmem [shape: f32[64,32], index: 4, kind: input, shape index: {}]
  %s5 = inlined_call_operand.vmem [shape: f32[1,32], index: 5, kind: input, shape index: {}]
  %s6 = inlined_call_operand.vmem [shape: f32[512,16], index: 6, kind: output, shape index: {0}]
  %s7 = inlined_call_operand.vmem [shape: f32[512,16], index: 7, kind: output, shape index: {1}]
  %s8 = inlined_call_operand.vmem [shape: f32[512,16], index: 8, kind: output, shape index: {2}]
  %9 = xla_tuple %s6, %s7, %s8
  %s10 = sld [smem:[#allocation0]]
  $region73: #{tpu_custom_call.1} parent=0
    _
  %s12 = ssub.s32 1, %s10
  %s13 = scalar_select 0, %s12, %s10
  loop: start=0, step=1, limit=4
  $region2: #{tpu_custom_call.1} parent=0 // loop_pre_header
    _
  $region3: #{tpu_custom_call.1} parent=0 // loop_header
    %s15 = sphi 0, %s19
    %p16 = scmp.ge.s32.totalorder %s15, 4
    %s25 = sphi 0, %s27
    %s28 = sphi 0, %s25
    %s29 = sphi 0, %s28
    %s45 = sphi 0, %s29
    %s51 = sphi 0, %s53
    %s54 = sphi 0, %s51
    %s55 = sphi 0, %s54
    %s71 = sphi 0, %s55
    %s75 = sphi 0, %s75
    %s77 = sphi 0, %s75
    %s78 = sphi 0, %s77
    %s92 = sphi 0, %s78
    %s96 = sphi 0, %s96
    %s98 = sphi 0, %s96
    %s99 = sphi 0, %s98
    %s113 = sphi 0, %s99
    %s117 = sphi 0, %s117
    %s119 = sphi 0, %s117
    %s120 = sphi 0, %s119
    %s134 = sphi 0, %s120
    %s138 = sphi 0, %s138
    %s140 = sphi 0, %s138
    %s141 = sphi 0, %s140
    %s155 = sphi 0, %s141
    %s161 = sphi 0, %s163
    %s164 = sphi 0, %s161
    %s165 = sphi 0, %s164
    %s181 = sphi 0, %s165
    %s187 = sphi 0, %s189
    %s190 = sphi 0, %s187
    %s191 = sphi 0, %s190
    %s207 = sphi 0, %s191
    %s213 = sphi 0, %s215
    %s216 = sphi 0, %s213
    %s217 = sphi 0, %s216
    %s233 = sphi 0, %s217
  $region4: #{tpu_custom_call.1} parent=0 // loop_header_branch
    %18 = sbr.rel (%p16) target = $region8
  $region5: #{tpu_custom_call.1} parent=0 // loop_body
    %s20 = ssub.s32 %s15, 1
    %s21 = ssub.s32 %s15, 2
    %s22 = sadd.s32 %s15, 1
    %s23 = ssub.s32 %s15, %s22
    %p24 = scmp.eq.s32.totalorder %s23, 0
    %s26 = sadd.s32 %s25, 1
    %s27 = scalar_select %p24, %s25, %s26
    %p30 = pneg %p24
    %p31 = scmp.eq.s32.totalorder %s15, 1
    %p32 = por %p30, %p31
    %p33 = scmp.ne.s32.totalorder %s25, %s28
    %p34 = scmp.eq.s32.totalorder %s15, 0
    %p35 = por %p33, %p34
    %p36 = scmp.ne.s32.totalorder %s25, %s28
    %p37 = scmp.eq.s32.totalorder %s20, 1
    %p38 = por %p36, %p37
    %p39 = scmp.ne.s32.totalorder %s28, %s29
    %p40 = scmp.eq.s32.totalorder %s20, 0
    %p41 = por %p39, %p40
    %p42 = scmp.ne.s32.totalorder %s28, %s29
    %p43 = scmp.eq.s32.totalorder %s21, 1
    %p44 = por %p42, %p43
    %p46 = scmp.ne.s32.totalorder %s29, %s45
    %p47 = scmp.eq.s32.totalorder %s21, 0
    %p48 = por %p46, %p47
    %s49 = ssub.s32 %s15, %s22
    %p50 = scmp.eq.s32.totalorder %s49, 0
    %s52 = sadd.s32 %s51, 1
    %s53 = scalar_select %p50, %s51, %s52
    %p56 = pneg %p50
    %p57 = scmp.eq.s32.totalorder %s15, 1
    %p58 = por %p56, %p57
    %p59 = scmp.ne.s32.totalorder %s51, %s54
    %p60 = scmp.eq.s32.totalorder %s15, 0
    %p61 = por %p59, %p60
    %p62 = scmp.ne.s32.totalorder %s51, %s54
    %p63 = scmp.eq.s32.totalorder %s20, 1
    %p64 = por %p62, %p63
    %p65 = scmp.ne.s32.totalorder %s54, %s55
    %p66 = scmp.eq.s32.totalorder %s20, 0
    %p67 = por %p65, %p66
    %p68 = scmp.ne.s32.totalorder %s54, %s55
    %p69 = scmp.eq.s32.totalorder %s21, 1
    %p70 = por %p68, %p69
    %p72 = scmp.ne.s32.totalorder %s55, %s71
    %p73 = scmp.eq.s32.totalorder %s21, 0
    %p74 = por %p72, %p73
    %s76 = sadd.s32 %s75, 1
    %p79 = scmp.eq.s32.totalorder %s15, 1
    %p80 = scmp.ne.s32.totalorder %s75, %s77
    %p81 = scmp.eq.s32.totalorder %s15, 0
    %p82 = por %p80, %p81
    %p83 = scmp.ne.s32.totalorder %s75, %s77
    %p84 = scmp.eq.s32.totalorder %s20, 1
    %p85 = por %p83, %p84
    %p86 = scmp.ne.s32.totalorder %s77, %s78
    %p87 = scmp.eq.s32.totalorder %s20, 0
    %p88 = por %p86, %p87
    %p89 = scmp.ne.s32.totalorder %s77, %s78
    %p90 = scmp.eq.s32.totalorder %s21, 1
    %p91 = por %p89, %p90
    %p93 = scmp.ne.s32.totalorder %s78, %s92
    %p94 = scmp.eq.s32.totalorder %s21, 0
    %p95 = por %p93, %p94
    %s97 = sadd.s32 %s96, 1
    %p100 = scmp.eq.s32.totalorder %s15, 1
    %p101 = scmp.ne.s32.totalorder %s96, %s98
    %p102 = scmp.eq.s32.totalorder %s15, 0
    %p103 = por %p101, %p102
    %p104 = scmp.ne.s32.totalorder %s96, %s98
    %p105 = scmp.eq.s32.totalorder %s20, 1
    %p106 = por %p104, %p105
    %p107 = scmp.ne.s32.totalorder %s98, %s99
    %p108 = scmp.eq.s32.totalorder %s20, 0
    %p109 = por %p107, %p108
    %p110 = scmp.ne.s32.totalorder %s98, %s99
    %p111 = scmp.eq.s32.totalorder %s21, 1
    %p112 = por %p110, %p111
    %p114 = scmp.ne.s32.totalorder %s99, %s113
    %p115 = scmp.eq.s32.totalorder %s21, 0
    %p116 = por %p114, %p115
    %s118 = sadd.s32 %s117, 1
    %p121 = scmp.eq.s32.totalorder %s15, 1
    %p122 = scmp.ne.s32.totalorder %s117, %s119
    %p123 = scmp.eq.s32.totalorder %s15, 0
    %p124 = por %p122, %p123
    %p125 = scmp.ne.s32.totalorder %s117, %s119
    %p126 = scmp.eq.s32.totalorder %s20, 1
    %p127 = por %p125, %p126
    %p128 = scmp.ne.s32.totalorder %s119, %s120
    %p129 = scmp.eq.s32.totalorder %s20, 0
    %p130 = por %p128, %p129
    %p131 = scmp.ne.s32.totalorder %s119, %s120
    %p132 = scmp.eq.s32.totalorder %s21, 1
    %p133 = por %p131, %p132
    %p135 = scmp.ne.s32.totalorder %s120, %s134
    %p136 = scmp.eq.s32.totalorder %s21, 0
    %p137 = por %p135, %p136
    %s139 = sadd.s32 %s138, 1
    %p142 = scmp.eq.s32.totalorder %s15, 1
    %p143 = scmp.ne.s32.totalorder %s138, %s140
    %p144 = scmp.eq.s32.totalorder %s15, 0
    %p145 = por %p143, %p144
    %p146 = scmp.ne.s32.totalorder %s138, %s140
    %p147 = scmp.eq.s32.totalorder %s20, 1
    %p148 = por %p146, %p147
    %p149 = scmp.ne.s32.totalorder %s140, %s141
    %p150 = scmp.eq.s32.totalorder %s20, 0
    %p151 = por %p149, %p150
    %p152 = scmp.ne.s32.totalorder %s140, %s141
    %p153 = scmp.eq.s32.totalorder %s21, 1
    %p154 = por %p152, %p153
    %p156 = scmp.ne.s32.totalorder %s141, %s155
    %p157 = scmp.eq.s32.totalorder %s21, 0
    %p158 = por %p156, %p157
    %s159 = ssub.s32 %s15, %s22
    %p160 = scmp.eq.s32.totalorder %s159, 0
    %s162 = sadd.s32 %s161, 1
    %s163 = scalar_select %p160, %s161, %s162
    %p166 = pneg %p160
    %p167 = scmp.eq.s32.totalorder %s15, 1
    %p168 = por %p166, %p167
    %p169 = scmp.ne.s32.totalorder %s161, %s164
    %p170 = scmp.eq.s32.totalorder %s15, 0
    %p171 = por %p169, %p170
    %p172 = scmp.ne.s32.totalorder %s161, %s164
    %p173 = scmp.eq.s32.totalorder %s20, 1
    %p174 = por %p172, %p173
    %p175 = scmp.ne.s32.totalorder %s164, %s165
    %p176 = scmp.eq.s32.totalorder %s20, 0
    %p177 = por %p175, %p176
    %p178 = scmp.ne.s32.totalorder %s164, %s165
    %p179 = scmp.eq.s32.totalorder %s21, 1
    %p180 = por %p178, %p179
    %p182 = scmp.ne.s32.totalorder %s165, %s181
    %p183 = scmp.eq.s32.totalorder %s21, 0
    %p184 = por %p182, %p183
    %s185 = ssub.s32 %s15, %s22
    %p186 = scmp.eq.s32.totalorder %s185, 0
    %s188 = sadd.s32 %s187, 1
    %s189 = scalar_select %p186, %s187, %s188
    %p192 = pneg %p186
    %p193 = scmp.eq.s32.totalorder %s15, 1
    %p194 = por %p192, %p193
    %p195 = scmp.ne.s32.totalorder %s187, %s190
    %p196 = scmp.eq.s32.totalorder %s15, 0
    %p197 = por %p195, %p196
    %p198 = scmp.ne.s32.totalorder %s187, %s190
    %p199 = scmp.eq.s32.totalorder %s20, 1
    %p200 = por %p198, %p199
    %p201 = scmp.ne.s32.totalorder %s190, %s191
    %p202 = scmp.eq.s32.totalorder %s20, 0
    %p203 = por %p201, %p202
    %p204 = scmp.ne.s32.totalorder %s190, %s191
    %p205 = scmp.eq.s32.totalorder %s21, 1
    %p206 = por %p204, %p205
    %p208 = scmp.ne.s32.totalorder %s191, %s207
    %p209 = scmp.eq.s32.totalorder %s21, 0
    %p210 = por %p208, %p209
    %s211 = ssub.s32 %s15, %s22
    %p212 = scmp.eq.s32.totalorder %s211, 0
    %s214 = sadd.s32 %s213, 1
    %s215 = scalar_select %p212, %s213, %s214
    %p218 = pneg %p212
    %p219 = scmp.eq.s32.totalorder %s15, 1
    %p220 = por %p218, %p219
    %p221 = scmp.ne.s32.totalorder %s213, %s216
    %p222 = scmp.eq.s32.totalorder %s15, 0
    %p223 = por %p221, %p222
    %p224 = scmp.ne.s32.totalorder %s213, %s216
    %p225 = scmp.eq.s32.totalorder %s20, 1
    %p226 = por %p224, %p225
    %p227 = scmp.ne.s32.totalorder %s216, %s217
    %p228 = scmp.eq.s32.totalorder %s20, 0
    %p229 = por %p227, %p228
    %p230 = scmp.ne.s32.totalorder %s216, %s217
    %p231 = scmp.eq.s32.totalorder %s21, 1
    %p232 = por %p230, %p231
    %p234 = scmp.ne.s32.totalorder %s217, %s233
    %p235 = scmp.eq.s32.totalorder %s21, 0
    %p236 = por %p234, %p235
    %p237 = scmp.le.s32.totalorder 1, %s15
    %p238 = scmp.lt.s32.totalorder %s15, 3
    %p239 = pnand %p237, %p238
    %p240 = pneg %p239
    // Predicated region
    $region9: #{tpu_custom_call.1} parent=5 // pred_check
      _
    $region10: #{tpu_custom_call.1} parent=5 // pred_check_branch
      %242 = sbr.rel (%p239) target = $region12
    $region11: #{tpu_custom_call.1} parent=5 // pred_region
      %s243 = ssub.s32 %s15, 1
      // Predicated region
      $region13: #{tpu_custom_call.1} parent=11 // pred_check
        %p244 = pneg %p88
      $region14: #{tpu_custom_call.1} parent=11 // pred_check_branch
        %246 = sbr.rel (%p244) target = $region16
      $region15: #{tpu_custom_call.1} parent=11 // pred_region
        _
      $region16: #{tpu_custom_call.1} parent=11 // pred_fallthru
        _
      // Predicated region
      $region17: #{tpu_custom_call.1} parent=11 // pred_check
        %p247 = pneg %p109
      $region18: #{tpu_custom_call.1} parent=11 // pred_check_branch
        %249 = sbr.rel (%p247) target = $region20
      $region19: #{tpu_custom_call.1} parent=11 // pred_region
        _
      $region20: #{tpu_custom_call.1} parent=11 // pred_fallthru
        _
      // Predicated region
      $region21: #{tpu_custom_call.1} parent=11 // pred_check
        %p250 = pneg %p130
      $region22: #{tpu_custom_call.1} parent=11 // pred_check_branch
        %252 = sbr.rel (%p250) target = $region24
      $region23: #{tpu_custom_call.1} parent=11 // pred_region
        _
      $region24: #{tpu_custom_call.1} parent=11 // pred_fallthru
        _
      // Predicated region
      $region25: #{tpu_custom_call.1} parent=11 // pred_check
        %p253 = pneg %p151
      $region26: #{tpu_custom_call.1} parent=11 // pred_check_branch
        %255 = sbr.rel (%p253) target = $region28
      $region27: #{tpu_custom_call.1} parent=11 // pred_region
        _
      $region28: #{tpu_custom_call.1} parent=11 // pred_fallthru
        _
    $region12: #{tpu_custom_call.1} parent=5 // pred_fallthru
      _
    %p256 = scmp.lt.s32.totalorder %s15, 2
    // Predicated region
    $region29: #{tpu_custom_call.1} parent=5 // pred_check
      %p257 = pneg %p256
    $region30: #{tpu_custom_call.1} parent=5 // pred_check_branch
      %259 = sbr.rel (%p257) target = $region32
    $region31: #{tpu_custom_call.1} parent=5 // pred_region
      // Predicated region
      $region33: #{tpu_custom_call.1} parent=31 // pred_check
        %p260 = pneg %p35
      $region34: #{tpu_custom_call.1} parent=31 // pred_check_branch
        %262 = sbr.rel (%p260) target = $region36
      $region35: #{tpu_custom_call.1} parent=31 // pred_region
        %s263 = smul.u32 32, %s15
        %p264 = scmp.lt.s32.totalorder %s263, 63
        %s265 = scalar_select %p264, %s263, 63
        %s266 = smul.addr %s265, 8
        %s267 = scalar_lea.vmem %s0, %s266
        %s268 = smul.u32 32, %s15
      $region36: #{tpu_custom_call.1} parent=31 // pred_fallthru
        _
      // Predicated region
      $region37: #{tpu_custom_call.1} parent=31 // pred_check
        %p269 = pneg %p61
      $region38: #{tpu_custom_call.1} parent=31 // pred_check_branch
        %271 = sbr.rel (%p269) target = $region40
      $region39: #{tpu_custom_call.1} parent=31 // pred_region
        %s272 = smul.u32 32, %s15
        %p273 = scmp.lt.s32.totalorder %s272, 63
        %s274 = scalar_select %p273, %s272, 63
        %s275 = smul.addr %s274, 8
        %s276 = scalar_lea.vmem %s1, %s275
        %s277 = smul.u32 32, %s15
      $region40: #{tpu_custom_call.1} parent=31 // pred_fallthru
        _
    $region32: #{tpu_custom_call.1} parent=5 // pred_fallthru
      _
    %p278 = scmp.le.s32.totalorder 1, %s15
    %p279 = scmp.lt.s32.totalorder %s15, 3
    %p280 = pnand %p278, %p279
    %p281 = pneg %p280
    // Predicated region
    $region41: #{tpu_custom_call.1} parent=5 // pred_check
      _
    $region42: #{tpu_custom_call.1} parent=5 // pred_check_branch
      %283 = sbr.rel (%p280) target = $region44
    $region43: #{tpu_custom_call.1} parent=5 // pred_region
      %s284 = ssub.s32 %s15, 1
      %s285 = smul.u32 32, %s20
      %p286 = scmp.lt.s32.totalorder %s285, 63
      %s287 = scalar_select %p286, %s285, 63
      %s288 = smul.addr %s287, 8
      %s289 = scalar_lea.vmem %s0, %s288
      %p290 = pneg %p41
      %p291 = pneg %p38
      %s292 = smul.u32 32, %s20
      %p293 = scmp.lt.s32.totalorder %s292, 63
      %s294 = scalar_select %p293, %s292, 63
      %s295 = smul.addr %s294, 8
      %s296 = scalar_lea.vmem %s1, %s295
      %p297 = pneg %p67
      %p298 = pneg %p64
      %p299 = pneg %p88
      %p300 = pneg %p85
      %p301 = pneg %p109
      %p302 = pneg %p106
      %p303 = pneg %p130
      %p304 = pneg %p127
      %p305 = pneg %p151
      %p306 = pneg %p148
      %p307 = pneg %p177
      %p308 = pneg %p174
      %s309 = smul.u32 32, %s20
      %p310 = scmp.lt.s32.totalorder %s309, 63
      %s311 = scalar_select %p310, %s309, 63
      %s312 = smul.addr %s311, 8
      %s313 = scalar_lea.vmem %s6, %s312
      %p314 = pneg %p203
      %p315 = pneg %p200
      %s316 = smul.u32 32, %s20
      %p317 = scmp.lt.s32.totalorder %s316, 63
      %s318 = scalar_select %p317, %s316, 63
      %s319 = smul.addr %s318, 8
      %s320 = scalar_lea.vmem %s7, %s319
      %p321 = pneg %p229
      %p322 = pneg %p226
      %s323 = smul.u32 32, %s20
      %p324 = scmp.lt.s32.totalorder %s323, 63
      %s325 = scalar_select %p324, %s323, 63
      %s326 = smul.addr %s325, 8
      %s327 = scalar_lea.vmem %s8, %s326
      %s328 = smul.u32 32, %s20
      %p329 = scmp.lt.s32.totalorder %s328, 63
      %s330 = scalar_select %p329, %s328, 63
      %s331 = smul.addr %s330, 8
      %s332 = scalar_lea.vmem %s0, %s331
      %s333 = smul.u32 32, %s20
      %s334 = smul.u32 32, %s20
      %p335 = scmp.lt.s32.totalorder %s334, 63
      %s336 = scalar_select %p335, %s334, 63
      %s337 = smul.addr %s336, 8
      %s338 = scalar_lea.vmem %s1, %s337
      %s339 = smul.u32 32, %s20
      %s340 = smul.u32 32, %s20
      %p341 = scmp.lt.s32.totalorder %s340, 63
      %s342 = scalar_select %p341, %s340, 63
      %s343 = smul.addr %s342, 8
      %s344 = scalar_lea.vmem %s6, %s343
      %s345 = smul.u32 32, %s20
      %s346 = smul.u32 32, %s20
      %p347 = scmp.lt.s32.totalorder %s346, 63
      %s348 = scalar_select %p347, %s346, 63
      %s349 = smul.addr %s348, 8
      %s350 = scalar_lea.vmem %s7, %s349
      %s351 = smul.u32 32, %s20
      %s352 = smul.u32 32, %s20
      %p353 = scmp.lt.s32.totalorder %s352, 63
      %s354 = scalar_select %p353, %s352, 63
      %s355 = smul.addr %s354, 8
      %s356 = scalar_lea.vmem %s8, %s355
      %s357 = smul.u32 32, %s20
      %v358 = vld [vmem:[%s332] sm:$0xff]
      %v359 = vld [vmem:[%s332 + $0x8] sm:$0xff]
      %v360 = vld [vmem:[%s332 + $0x10] sm:$0xff]
      %v361 = vld [vmem:[%s332 + $0x18] sm:$0xff]
      %v362 = vld [vmem:[%s332 + $0x20] sm:$0xff]
      %v363 = vld [vmem:[%s332 + $0x28] sm:$0xff]
      %v364 = vld [vmem:[%s332 + $0x30] sm:$0xff]
      %v365 = vld [vmem:[%s332 + $0x38] sm:$0xff]
      %v366 = vld [vmem:[%s332 + $0x40] sm:$0xff]
      %v367 = vld [vmem:[%s332 + $0x48] sm:$0xff]
      %v368 = vld [vmem:[%s332 + $0x50] sm:$0xff]
      %v369 = vld [vmem:[%s332 + $0x58] sm:$0xff]
      %v370 = vld [vmem:[%s332 + $0x60] sm:$0xff]
      %v371 = vld [vmem:[%s332 + $0x68] sm:$0xff]
      %v372 = vld [vmem:[%s332 + $0x70] sm:$0xff]
      %v373 = vld [vmem:[%s332 + $0x78] sm:$0xff]
      %v374 = vld [vmem:[%s332 + $0x80] sm:$0xff]
      %v375 = vld [vmem:[%s332 + $0x88] sm:$0xff]
      %v376 = vld [vmem:[%s332 + $0x90] sm:$0xff]
      %v377 = vld [vmem:[%s332 + $0x98] sm:$0xff]
      %v378 = vld [vmem:[%s332 + $0xa0] sm:$0xff]
      %v379 = vld [vmem:[%s332 + $0xa8] sm:$0xff]
      %v380 = vld [vmem:[%s332 + $0xb0] sm:$0xff]
      %v381 = vld [vmem:[%s332 + $0xb8] sm:$0xff]
      %v382 = vld [vmem:[%s332 + $0xc0] sm:$0xff]
      %v383 = vld [vmem:[%s332 + $0xc8] sm:$0xff]
      %v384 = vld [vmem:[%s332 + $0xd0] sm:$0xff]
      %v385 = vld [vmem:[%s332 + $0xd8] sm:$0xff]
      %v386 = vld [vmem:[%s332 + $0xe0] sm:$0xff]
      %v387 = vld [vmem:[%s332 + $0xe8] sm:$0xff]
      %v388 = vld [vmem:[%s332 + $0xf0] sm:$0xff]
      %v389 = vld [vmem:[%s332 + $0xf8] sm:$0xff]
      %v390 = vld [vmem:[%s2] sm:$0xff]
      %v391 = vld [vmem:[%s2 + $0x8] sm:$0xff]
      %v392 = vld [vmem:[%s2 + $0x10] sm:$0xff]
      %v393 = vld [vmem:[%s2 + $0x18] sm:$0xff]
      %v394 = vld [vmem:[%s3] sm:$0x1]
      %v396 = vperm.slane %v394, 0
      %vm398 = vcmask 261120
      %v400 = vsel %vm398, %v358, 0
      %v403 = vsel %vm398, %v359, 0
      %v406 = vsel %vm398, %v360, 0
      %v409 = vsel %vm398, %v361, 0
      %v412 = vsel %vm398, %v362, 0
      %v415 = vsel %vm398, %v363, 0
      %v418 = vsel %vm398, %v364, 0
      %v421 = vsel %vm398, %v365, 0
      %v424 = vsel %vm398, %v366, 0
      %v427 = vsel %vm398, %v367, 0
      %v430 = vsel %vm398, %v368, 0
      %v433 = vsel %vm398, %v369, 0
      %v436 = vsel %vm398, %v370, 0
      %v439 = vsel %vm398, %v371, 0
      %v442 = vsel %vm398, %v372, 0
      %v445 = vsel %vm398, %v373, 0
      %v448 = vsel %vm398, %v374, 0
      %v451 = vsel %vm398, %v375, 0
      %v454 = vsel %vm398, %v376, 0
      %v457 = vsel %vm398, %v377, 0
      %v460 = vsel %vm398, %v378, 0
      %v463 = vsel %vm398, %v379, 0
      %v466 = vsel %vm398, %v380, 0
      %v469 = vsel %vm398, %v381, 0
      %v472 = vsel %vm398, %v382, 0
      %v475 = vsel %vm398, %v383, 0
      %v478 = vsel %vm398, %v384, 0
      %v481 = vsel %vm398, %v385, 0
      %v484 = vsel %vm398, %v386, 0
      %v487 = vsel %vm398, %v387, 0
      %v490 = vsel %vm398, %v388, 0
      %v493 = vsel %vm398, %v389, 0
      %495 = vmatpush.msra.mxu0 0.0
      %496 = vmatpush.msra.mxu0 0.0
      %497 = vmatpush.msra.mxu0 0.0
      %498 = vmatpush.msra.mxu0 0.0
      %499 = vmatpush.msra.mxu0 0.0
      %500 = vmatpush.msra.mxu0 0.0
      %501 = vmatpush.msra.mxu0 0.0
      %502 = vmatpush.msra.mxu0 0.0
      %503 = vmatpush.msra.mxu0 0.0
      %504 = vmatpush.msra.mxu0 0.0
      %505 = vmatpush.msra.mxu0 0.0
      %506 = vmatpush.msra.mxu0 0.0
      %507 = vmatpush.msra.mxu0 %v393
      %508 = vmatpush.msra.mxu0 %v392
      %509 = vmatpush.msra.mxu0 %v391
      %510 = vmatpush.msra.mxu0 %v390
      %511 = vmatmul.f32.gmra.mxu0 %v400
      %v512 = vpop.f32.mrf.mxu0
      %v513 = vadd.f32 %v396, %v512
      %514 = vmatmul.f32.gmra.mxu0 %v403
      %v515 = vpop.f32.mrf.mxu0
      %v516 = vadd.f32 %v396, %v515
      %517 = vmatmul.f32.gmra.mxu0 %v406
      %v518 = vpop.f32.mrf.mxu0
      %v519 = vadd.f32 %v396, %v518
      %520 = vmatmul.f32.gmra.mxu0 %v409
      %v521 = vpop.f32.mrf.mxu0
      %v522 = vadd.f32 %v396, %v521
      %523 = vmatmul.f32.gmra.mxu0 %v412
      %v524 = vpop.f32.mrf.mxu0
      %v525 = vadd.f32 %v396, %v524
      %526 = vmatmul.f32.gmra.mxu0 %v415
      %v527 = vpop.f32.mrf.mxu0
      %v528 = vadd.f32 %v396, %v527
      %529 = vmatmul.f32.gmra.mxu0 %v418
      %v530 = vpop.f32.mrf.mxu0
      %v531 = vadd.f32 %v396, %v530
      %532 = vmatmul.f32.gmra.mxu0 %v421
      %v533 = vpop.f32.mrf.mxu0
      %v534 = vadd.f32 %v396, %v533
      %535 = vmatmul.f32.gmra.mxu0 %v424
      %v536 = vpop.f32.mrf.mxu0
      %v537 = vadd.f32 %v396, %v536
      %538 = vmatmul.f32.gmra.mxu0 %v427
      %v539 = vpop.f32.mrf.mxu0
      %v540 = vadd.f32 %v396, %v539
      %541 = vmatmul.f32.gmra.mxu0 %v430
      %v542 = vpop.f32.mrf.mxu0
      %v543 = vadd.f32 %v396, %v542
      %544 = vmatmul.f32.gmra.mxu0 %v433
      %v545 = vpop.f32.mrf.mxu0
      %v546 = vadd.f32 %v396, %v545
      %547 = vmatmul.f32.gmra.mxu0 %v436
      %v548 = vpop.f32.mrf.mxu0
      %v549 = vadd.f32 %v396, %v548
      %550 = vmatmul.f32.gmra.mxu0 %v439
      %v551 = vpop.f32.mrf.mxu0
      %v552 = vadd.f32 %v396, %v551
      %553 = vmatmul.f32.gmra.mxu0 %v442
      %v554 = vpop.f32.mrf.mxu0
      %v555 = vadd.f32 %v396, %v554
      %556 = vmatmul.f32.gmra.mxu0 %v445
      %v557 = vpop.f32.mrf.mxu0
      %v558 = vadd.f32 %v396, %v557
      %559 = vmatmul.f32.gmra.mxu0 %v448
      %v560 = vpop.f32.mrf.mxu0
      %v561 = vadd.f32 %v396, %v560
      %562 = vmatmul.f32.gmra.mxu0 %v451
      %v563 = vpop.f32.mrf.mxu0
      %v564 = vadd.f32 %v396, %v563
      %565 = vmatmul.f32.gmra.mxu0 %v454
      %v566 = vpop.f32.mrf.mxu0
      %v567 = vadd.f32 %v396, %v566
      %568 = vmatmul.f32.gmra.mxu0 %v457
      %v569 = vpop.f32.mrf.mxu0
      %v570 = vadd.f32 %v396, %v569
      %571 = vmatmul.f32.gmra.mxu0 %v460
      %v572 = vpop.f32.mrf.mxu0
      %v573 = vadd.f32 %v396, %v572
      %574 = vmatmul.f32.gmra.mxu0 %v463
      %v575 = vpop.f32.mrf.mxu0
      %v576 = vadd.f32 %v396, %v575
      %577 = vmatmul.f32.gmra.mxu0 %v466
      %v578 = vpop.f32.mrf.mxu0
      %v579 = vadd.f32 %v396, %v578
      %580 = vmatmul.f32.gmra.mxu0 %v469
      %v581 = vpop.f32.mrf.mxu0
      %v582 = vadd.f32 %v396, %v581
      %583 = vmatmul.f32.gmra.mxu0 %v472
      %v584 = vpop.f32.mrf.mxu0
      %v585 = vadd.f32 %v396, %v584
      %586 = vmatmul.f32.gmra.mxu0 %v475
      %v587 = vpop.f32.mrf.mxu0
      %v588 = vadd.f32 %v396, %v587
      %589 = vmatmul.f32.gmra.mxu0 %v478
      %v590 = vpop.f32.mrf.mxu0
      %v591 = vadd.f32 %v396, %v590
      %592 = vmatmul.f32.gmra.mxu0 %v481
      %v593 = vpop.f32.mrf.mxu0
      %v594 = vadd.f32 %v396, %v593
      %595 = vmatmul.f32.gmra.mxu0 %v484
      %v596 = vpop.f32.mrf.mxu0
      %v597 = vadd.f32 %v396, %v596
      %598 = vmatmul.f32.gmra.mxu0 %v487
      %v599 = vpop.f32.mrf.mxu0
      %v600 = vadd.f32 %v396, %v599
      %601 = vmatmul.f32.gmra.mxu0 %v490
      %v602 = vpop.f32.mrf.mxu0
      %v603 = vadd.f32 %v396, %v602
      %604 = vmatmul.f32.gmra.mxu0 %v493
      %v605 = vpop.f32.mrf.mxu0
      %v606 = vadd.f32 %v396, %v605
      %607 = vdwg.mxu0
      %v608 = vmax.f32 %v513, 0.0
      %v609 = vmax.f32 %v516, 0.0
      %v610 = vmax.f32 %v519, 0.0
      %v611 = vmax.f32 %v522, 0.0
      %v612 = vmax.f32 %v525, 0.0
      %v613 = vmax.f32 %v528, 0.0
      %v614 = vmax.f32 %v531, 0.0
      %v615 = vmax.f32 %v534, 0.0
      %v616 = vmax.f32 %v537, 0.0
      %v617 = vmax.f32 %v540, 0.0
      %v618 = vmax.f32 %v543, 0.0
      %v619 = vmax.f32 %v546, 0.0
      %v620 = vmax.f32 %v549, 0.0
      %v621 = vmax.f32 %v552, 0.0
      %v622 = vmax.f32 %v555, 0.0
      %v623 = vmax.f32 %v558, 0.0
      %v624 = vmax.f32 %v561, 0.0
      %v625 = vmax.f32 %v564, 0.0
      %v626 = vmax.f32 %v567, 0.0
      %v627 = vmax.f32 %v570, 0.0
      %v628 = vmax.f32 %v573, 0.0
      %v629 = vmax.f32 %v576, 0.0
      %v630 = vmax.f32 %v579, 0.0
      %v631 = vmax.f32 %v582, 0.0
      %v632 = vmax.f32 %v585, 0.0
      %v633 = vmax.f32 %v588, 0.0
      %v634 = vmax.f32 %v591, 0.0
      %v635 = vmax.f32 %v594, 0.0
      %v636 = vmax.f32 %v597, 0.0
      %v637 = vmax.f32 %v600, 0.0
      %v638 = vmax.f32 %v603, 0.0
      %v639 = vmax.f32 %v606, 0.0
      %v640 = vld [vmem:[%s4] sm:$0xff]
      %v641 = vld [vmem:[%s4 + $0x8] sm:$0xff]
      %v642 = vld [vmem:[%s4 + $0x10] sm:$0xff]
      %v643 = vld [vmem:[%s4 + $0x18] sm:$0xff]
      %v644 = vld [vmem:[%s4 + $0x20] sm:$0xff]
      %v645 = vld [vmem:[%s4 + $0x28] sm:$0xff]
      %v646 = vld [vmem:[%s4 + $0x30] sm:$0xff]
      %v647 = vld [vmem:[%s4 + $0x38] sm:$0xff]
      %v648 = vld [vmem:[%s5] sm:$0x1]
      %v650 = vperm.slane %v648, 0
      %vm652 = vcmask 523264
      %v654 = vsel %vm652, %v608, 0
      %v657 = vsel %vm652, %v609, 0
      %v660 = vsel %vm652, %v610, 0
      %v663 = vsel %vm652, %v611, 0
      %v666 = vsel %vm652, %v612, 0
      %v669 = vsel %vm652, %v613, 0
      %v672 = vsel %vm652, %v614, 0
      %v675 = vsel %vm652, %v615, 0
      %v678 = vsel %vm652, %v616, 0
      %v681 = vsel %vm652, %v617, 0
      %v684 = vsel %vm652, %v618, 0
      %v687 = vsel %vm652, %v619, 0
      %v690 = vsel %vm652, %v620, 0
      %v693 = vsel %vm652, %v621, 0
      %v696 = vsel %vm652, %v622, 0
      %v699 = vsel %vm652, %v623, 0
      %v702 = vsel %vm652, %v624, 0
      %v705 = vsel %vm652, %v625, 0
      %v708 = vsel %vm652, %v626, 0
      %v711 = vsel %vm652, %v627, 0
      %v714 = vsel %vm652, %v628, 0
      %v717 = vsel %vm652, %v629, 0
      %v720 = vsel %vm652, %v630, 0
      %v723 = vsel %vm652, %v631, 0
      %v726 = vsel %vm652, %v632, 0
      %v729 = vsel %vm652, %v633, 0
      %v732 = vsel %vm652, %v634, 0
      %v735 = vsel %vm652, %v635, 0
      %v738 = vsel %vm652, %v636, 0
      %v741 = vsel %vm652, %v637, 0
      %v744 = vsel %vm652, %v638, 0
      %v747 = vsel %vm652, %v639, 0
      %749 = vmatpush.msra.mxu0 0.0
      %750 = vmatpush.msra.mxu0 0.0
      %751 = vmatpush.msra.mxu0 0.0
      %752 = vmatpush.msra.mxu0 0.0
      %753 = vmatpush.msra.mxu0 0.0
      %754 = vmatpush.msra.mxu0 0.0
      %755 = vmatpush.msra.mxu0 0.0
      %756 = vmatpush.msra.mxu0 0.0
      %757 = vmatpush.msra.mxu0 %v647
      %758 = vmatpush.msra.mxu0 %v646
      %759 = vmatpush.msra.mxu0 %v645
      %760 = vmatpush.msra.mxu0 %v644
      %761 = vmatpush.msra.mxu0 %v643
      %762 = vmatpush.msra.mxu0 %v642
      %763 = vmatpush.msra.mxu0 %v641
      %764 = vmatpush.msra.mxu0 %v640
      %765 = vmatmul.f32.gmra.mxu0 %v654
      %v766 = vpop.f32.mrf.mxu0
      %v767 = vadd.f32 %v650, %v766
      %768 = vmatmul.f32.gmra.mxu0 %v657
      %v769 = vpop.f32.mrf.mxu0
      %v770 = vadd.f32 %v650, %v769
      %771 = vmatmul.f32.gmra.mxu0 %v660
      %v772 = vpop.f32.mrf.mxu0
      %v773 = vadd.f32 %v650, %v772
      %774 = vmatmul.f32.gmra.mxu0 %v663
      %v775 = vpop.f32.mrf.mxu0
      %v776 = vadd.f32 %v650, %v775
      %777 = vmatmul.f32.gmra.mxu0 %v666
      %v778 = vpop.f32.mrf.mxu0
      %v779 = vadd.f32 %v650, %v778
      %780 = vmatmul.f32.gmra.mxu0 %v669
      %v781 = vpop.f32.mrf.mxu0
      %v782 = vadd.f32 %v650, %v781
      %783 = vmatmul.f32.gmra.mxu0 %v672
      %v784 = vpop.f32.mrf.mxu0
      %v785 = vadd.f32 %v650, %v784
      %786 = vmatmul.f32.gmra.mxu0 %v675
      %v787 = vpop.f32.mrf.mxu0
      %v788 = vadd.f32 %v650, %v787
      %789 = vmatmul.f32.gmra.mxu0 %v678
      %v790 = vpop.f32.mrf.mxu0
      %v791 = vadd.f32 %v650, %v790
      %792 = vmatmul.f32.gmra.mxu0 %v681
      %v793 = vpop.f32.mrf.mxu0
      %v794 = vadd.f32 %v650, %v793
      %795 = vmatmul.f32.gmra.mxu0 %v684
      %v796 = vpop.f32.mrf.mxu0
      %v797 = vadd.f32 %v650, %v796
      %798 = vmatmul.f32.gmra.mxu0 %v687
      %v799 = vpop.f32.mrf.mxu0
      %v800 = vadd.f32 %v650, %v799
      %801 = vmatmul.f32.gmra.mxu0 %v690
      %v802 = vpop.f32.mrf.mxu0
      %v803 = vadd.f32 %v650, %v802
      %804 = vmatmul.f32.gmra.mxu0 %v693
      %v805 = vpop.f32.mrf.mxu0
      %v806 = vadd.f32 %v650, %v805
      %807 = vmatmul.f32.gmra.mxu0 %v696
      %v808 = vpop.f32.mrf.mxu0
      %v809 = vadd.f32 %v650, %v808
      %810 = vmatmul.f32.gmra.mxu0 %v699
      %v811 = vpop.f32.mrf.mxu0
      %v812 = vadd.f32 %v650, %v811
      %813 = vmatmul.f32.gmra.mxu0 %v702
      %v814 = vpop.f32.mrf.mxu0
      %v815 = vadd.f32 %v650, %v814
      %816 = vmatmul.f32.gmra.mxu0 %v705
      %v817 = vpop.f32.mrf.mxu0
      %v818 = vadd.f32 %v650, %v817
      %819 = vmatmul.f32.gmra.mxu0 %v708
      %v820 = vpop.f32.mrf.mxu0
      %v821 = vadd.f32 %v650, %v820
      %822 = vmatmul.f32.gmra.mxu0 %v711
      %v823 = vpop.f32.mrf.mxu0
      %v824 = vadd.f32 %v650, %v823
      %825 = vmatmul.f32.gmra.mxu0 %v714
      %v826 = vpop.f32.mrf.mxu0
      %v827 = vadd.f32 %v650, %v826
      %828 = vmatmul.f32.gmra.mxu0 %v717
      %v829 = vpop.f32.mrf.mxu0
      %v830 = vadd.f32 %v650, %v829
      %831 = vmatmul.f32.gmra.mxu0 %v720
      %v832 = vpop.f32.mrf.mxu0
      %v833 = vadd.f32 %v650, %v832
      %834 = vmatmul.f32.gmra.mxu0 %v723
      %v835 = vpop.f32.mrf.mxu0
      %v836 = vadd.f32 %v650, %v835
      %837 = vmatmul.f32.gmra.mxu0 %v726
      %v838 = vpop.f32.mrf.mxu0
      %v839 = vadd.f32 %v650, %v838
      %840 = vmatmul.f32.gmra.mxu0 %v729
      %v841 = vpop.f32.mrf.mxu0
      %v842 = vadd.f32 %v650, %v841
      %843 = vmatmul.f32.gmra.mxu0 %v732
      %v844 = vpop.f32.mrf.mxu0
      %v845 = vadd.f32 %v650, %v844
      %846 = vmatmul.f32.gmra.mxu0 %v735
      %v847 = vpop.f32.mrf.mxu0
      %v848 = vadd.f32 %v650, %v847
      %849 = vmatmul.f32.gmra.mxu0 %v738
      %v850 = vpop.f32.mrf.mxu0
      %v851 = vadd.f32 %v650, %v850
      %852 = vmatmul.f32.gmra.mxu0 %v741
      %v853 = vpop.f32.mrf.mxu0
      %v854 = vadd.f32 %v650, %v853
      %855 = vmatmul.f32.gmra.mxu0 %v744
      %v856 = vpop.f32.mrf.mxu0
      %v857 = vadd.f32 %v650, %v856
      %858 = vmatmul.f32.gmra.mxu0 %v747
      %v859 = vpop.f32.mrf.mxu0
      %v860 = vadd.f32 %v650, %v859
      %861 = vdwg.mxu0
      %v862 = vmul.f32 %v767, 0.5
      %v863 = vmul.f32 %v770, 0.5
      %v864 = vmul.f32 %v773, 0.5
      %v865 = vmul.f32 %v776, 0.5
      %v866 = vmul.f32 %v779, 0.5
      %v867 = vmul.f32 %v782, 0.5
      %v868 = vmul.f32 %v785, 0.5
      %v869 = vmul.f32 %v788, 0.5
      %v870 = vmul.f32 %v791, 0.5
      %v871 = vmul.f32 %v794, 0.5
      %v872 = vmul.f32 %v797, 0.5
      %v873 = vmul.f32 %v800, 0.5
      %v874 = vmul.f32 %v803, 0.5
      %v875 = vmul.f32 %v806, 0.5
      %v876 = vmul.f32 %v809, 0.5
      %v877 = vmul.f32 %v812, 0.5
      %v878 = vmul.f32 %v815, 0.5
      %v879 = vmul.f32 %v818, 0.5
      %v880 = vmul.f32 %v821, 0.5
      %v881 = vmul.f32 %v824, 0.5
      %v882 = vmul.f32 %v827, 0.5
      %v883 = vmul.f32 %v830, 0.5
      %v884 = vmul.f32 %v833, 0.5
      %v885 = vmul.f32 %v836, 0.5
      %v886 = vmul.f32 %v839, 0.5
      %v887 = vmul.f32 %v842, 0.5
      %v888 = vmul.f32 %v845, 0.5
      %v889 = vmul.f32 %v848, 0.5
      %v890 = vmul.f32 %v851, 0.5
      %v891 = vmul.f32 %v854, 0.5
      %v892 = vmul.f32 %v857, 0.5
      %v893 = vmul.f32 %v860, 0.5
      %v894 = vmul.f32 %v862, 1.442695
      %v895 = vpow.pop %v894
      %v896 = vmul.f32 %v863, 1.442695
      %v897 = vpow.pop %v896
      %v898 = vmul.f32 %v864, 1.442695
      %v899 = vpow.pop %v898
      %v900 = vmul.f32 %v865, 1.442695
      %v901 = vpow.pop %v900
      %v902 = vmul.f32 %v866, 1.442695
      %v903 = vpow.pop %v902
      %v904 = vmul.f32 %v867, 1.442695
      %v905 = vpow.pop %v904
      %v906 = vmul.f32 %v868, 1.442695
      %v907 = vpow.pop %v906
      %v908 = vmul.f32 %v869, 1.442695
      %v909 = vpow.pop %v908
      %v910 = vmul.f32 %v870, 1.442695
      %v911 = vpow.pop %v910
      %v912 = vmul.f32 %v871, 1.442695
      %v913 = vpow.pop %v912
      %v914 = vmul.f32 %v872, 1.442695
      %v915 = vpow.pop %v914
      %v916 = vmul.f32 %v873, 1.442695
      %v917 = vpow.pop %v916
      %v918 = vmul.f32 %v874, 1.442695
      %v919 = vpow.pop %v918
      %v920 = vmul.f32 %v875, 1.442695
      %v921 = vpow.pop %v920
      %v922 = vmul.f32 %v876, 1.442695
      %v923 = vpow.pop %v922
      %v924 = vmul.f32 %v877, 1.442695
      %v925 = vpow.pop %v924
      %v926 = vmul.f32 %v878, 1.442695
      %v927 = vpow.pop %v926
      %v928 = vmul.f32 %v879, 1.442695
      %v929 = vpow.pop %v928
      %v930 = vmul.f32 %v880, 1.442695
      %v931 = vpow.pop %v930
      %v932 = vmul.f32 %v881, 1.442695
      %v933 = vpow.pop %v932
      %v934 = vmul.f32 %v882, 1.442695
      %v935 = vpow.pop %v934
      %v936 = vmul.f32 %v883, 1.442695
      %v937 = vpow.pop %v936
      %v938 = vmul.f32 %v884, 1.442695
      %v939 = vpow.pop %v938
      %v940 = vmul.f32 %v885, 1.442695
      %v941 = vpow.pop %v940
      %v942 = vmul.f32 %v886, 1.442695
      %v943 = vpow.pop %v942
      %v944 = vmul.f32 %v887, 1.442695
      %v945 = vpow.pop %v944
      %v946 = vmul.f32 %v888, 1.442695
      %v947 = vpow.pop %v946
      %v948 = vmul.f32 %v889, 1.442695
      %v949 = vpow.pop %v948
      %v950 = vmul.f32 %v890, 1.442695
      %v951 = vpow.pop %v950
      %v952 = vmul.f32 %v891, 1.442695
      %v953 = vpow.pop %v952
      %v954 = vmul.f32 %v892, 1.442695
      %v955 = vpow.pop %v954
      %v956 = vmul.f32 %v893, 1.442695
      %v957 = vpow.pop %v956
      %v958 = vld [vmem:[%s338] sm:$0xff]
      %v959 = vld [vmem:[%s338 + $0x8] sm:$0xff]
      %v960 = vld [vmem:[%s338 + $0x10] sm:$0xff]
      %v961 = vld [vmem:[%s338 + $0x18] sm:$0xff]
      %v962 = vld [vmem:[%s338 + $0x20] sm:$0xff]
      %v963 = vld [vmem:[%s338 + $0x28] sm:$0xff]
      %v964 = vld [vmem:[%s338 + $0x30] sm:$0xff]
      %v965 = vld [vmem:[%s338 + $0x38] sm:$0xff]
      %v966 = vld [vmem:[%s338 + $0x40] sm:$0xff]
      %v967 = vld [vmem:[%s338 + $0x48] sm:$0xff]
      %v968 = vld [vmem:[%s338 + $0x50] sm:$0xff]
      %v969 = vld [vmem:[%s338 + $0x58] sm:$0xff]
      %v970 = vld [vmem:[%s338 + $0x60] sm:$0xff]
      %v971 = vld [vmem:[%s338 + $0x68] sm:$0xff]
      %v972 = vld [vmem:[%s338 + $0x70] sm:$0xff]
      %v973 = vld [vmem:[%s338 + $0x78] sm:$0xff]
      %v974 = vld [vmem:[%s338 + $0x80] sm:$0xff]
      %v975 = vld [vmem:[%s338 + $0x88] sm:$0xff]
      %v976 = vld [vmem:[%s338 + $0x90] sm:$0xff]
      %v977 = vld [vmem:[%s338 + $0x98] sm:$0xff]
      %v978 = vld [vmem:[%s338 + $0xa0] sm:$0xff]
      %v979 = vld [vmem:[%s338 + $0xa8] sm:$0xff]
      %v980 = vld [vmem:[%s338 + $0xb0] sm:$0xff]
      %v981 = vld [vmem:[%s338 + $0xb8] sm:$0xff]
      %v982 = vld [vmem:[%s338 + $0xc0] sm:$0xff]
      %v983 = vld [vmem:[%s338 + $0xc8] sm:$0xff]
      %v984 = vld [vmem:[%s338 + $0xd0] sm:$0xff]
      %v985 = vld [vmem:[%s338 + $0xd8] sm:$0xff]
      %v986 = vld [vmem:[%s338 + $0xe0] sm:$0xff]
      %v987 = vld [vmem:[%s338 + $0xe8] sm:$0xff]
      %v988 = vld [vmem:[%s338 + $0xf0] sm:$0xff]
      %v989 = vld [vmem:[%s338 + $0xf8] sm:$0xff]
      %1022 = vrot.lane.b32.xlu0 %v895, 112
      %v1023 = vpop.permute.xlu0 %1022
      %1024 = vrot.lane.b32.xlu0 %v897, 112
      %v1025 = vpop.permute.xlu0 %1024
      %1026 = vrot.lane.b32.xlu0 %v899, 112
      %v1027 = vpop.permute.xlu0 %1026
      %1028 = vrot.lane.b32.xlu0 %v901, 112
      %v1029 = vpop.permute.xlu0 %1028
      %1030 = vrot.lane.b32.xlu0 %v903, 112
      %v1031 = vpop.permute.xlu0 %1030
      %1032 = vrot.lane.b32.xlu0 %v905, 112
      %v1033 = vpop.permute.xlu0 %1032
      %1034 = vrot.lane.b32.xlu0 %v907, 112
      %v1035 = vpop.permute.xlu0 %1034
      %1036 = vrot.lane.b32.xlu0 %v909, 112
      %v1037 = vpop.permute.xlu0 %1036
      %1038 = vrot.lane.b32.xlu0 %v911, 112
      %v1039 = vpop.permute.xlu0 %1038
      %1040 = vrot.lane.b32.xlu0 %v913, 112
      %v1041 = vpop.permute.xlu0 %1040
      %1042 = vrot.lane.b32.xlu0 %v915, 112
      %v1043 = vpop.permute.xlu0 %1042
      %1044 = vrot.lane.b32.xlu0 %v917, 112
      %v1045 = vpop.permute.xlu0 %1044
      %1046 = vrot.lane.b32.xlu0 %v919, 112
      %v1047 = vpop.permute.xlu0 %1046
      %1048 = vrot.lane.b32.xlu0 %v921, 112
      %v1049 = vpop.permute.xlu0 %1048
      %1050 = vrot.lane.b32.xlu0 %v923, 112
      %v1051 = vpop.permute.xlu0 %1050
      %1052 = vrot.lane.b32.xlu0 %v925, 112
      %v1053 = vpop.permute.xlu0 %1052
      %1054 = vrot.lane.b32.xlu0 %v927, 112
      %v1055 = vpop.permute.xlu0 %1054
      %1056 = vrot.lane.b32.xlu0 %v929, 112
      %v1057 = vpop.permute.xlu0 %1056
      %1058 = vrot.lane.b32.xlu0 %v931, 112
      %v1059 = vpop.permute.xlu0 %1058
      %1060 = vrot.lane.b32.xlu0 %v933, 112
      %v1061 = vpop.permute.xlu0 %1060
      %1062 = vrot.lane.b32.xlu0 %v935, 112
      %v1063 = vpop.permute.xlu0 %1062
      %1064 = vrot.lane.b32.xlu0 %v937, 112
      %v1065 = vpop.permute.xlu0 %1064
      %1066 = vrot.lane.b32.xlu0 %v939, 112
      %v1067 = vpop.permute.xlu0 %1066
      %1068 = vrot.lane.b32.xlu0 %v941, 112
      %v1069 = vpop.permute.xlu0 %1068
      %1070 = vrot.lane.b32.xlu0 %v943, 112
      %v1071 = vpop.permute.xlu0 %1070
      %1072 = vrot.lane.b32.xlu0 %v945, 112
      %v1073 = vpop.permute.xlu0 %1072
      %1074 = vrot.lane.b32.xlu0 %v947, 112
      %v1075 = vpop.permute.xlu0 %1074
      %1076 = vrot.lane.b32.xlu0 %v949, 112
      %v1077 = vpop.permute.xlu0 %1076
      %1078 = vrot.lane.b32.xlu0 %v951, 112
      %v1079 = vpop.permute.xlu0 %1078
      %1080 = vrot.lane.b32.xlu0 %v953, 112
      %v1081 = vpop.permute.xlu0 %1080
      %1082 = vrot.lane.b32.xlu0 %v955, 112
      %v1083 = vpop.permute.xlu0 %1082
      %1084 = vrot.lane.b32.xlu0 %v957, 112
      %v1085 = vpop.permute.xlu0 %1084
      %v1118 = vmul.f32 %v958, %v1023
      %v1119 = vmul.f32 %v959, %v1025
      %v1120 = vmul.f32 %v960, %v1027
      %v1121 = vmul.f32 %v961, %v1029
      %v1122 = vmul.f32 %v962, %v1031
      %v1123 = vmul.f32 %v963, %v1033
      %v1124 = vmul.f32 %v964, %v1035
      %v1125 = vmul.f32 %v965, %v1037
      %v1126 = vmul.f32 %v966, %v1039
      %v1127 = vmul.f32 %v967, %v1041
      %v1128 = vmul.f32 %v968, %v1043
      %v1129 = vmul.f32 %v969, %v1045
      %v1130 = vmul.f32 %v970, %v1047
      %v1131 = vmul.f32 %v971, %v1049
      %v1132 = vmul.f32 %v972, %v1051
      %v1133 = vmul.f32 %v973, %v1053
      %v1134 = vmul.f32 %v974, %v1055
      %v1135 = vmul.f32 %v975, %v1057
      %v1136 = vmul.f32 %v976, %v1059
      %v1137 = vmul.f32 %v977, %v1061
      %v1138 = vmul.f32 %v978, %v1063
      %v1139 = vmul.f32 %v979, %v1065
      %v1140 = vmul.f32 %v980, %v1067
      %v1141 = vmul.f32 %v981, %v1069
      %v1142 = vmul.f32 %v982, %v1071
      %v1143 = vmul.f32 %v983, %v1073
      %v1144 = vmul.f32 %v984, %v1075
      %v1145 = vmul.f32 %v985, %v1077
      %v1146 = vmul.f32 %v986, %v1079
      %v1147 = vmul.f32 %v987, %v1081
      %v1148 = vmul.f32 %v988, %v1083
      %v1149 = vmul.f32 %v989, %v1085
      %v1150 = vadd.f32 %v1118, %v767
      %v1151 = vadd.f32 %v1119, %v770
      %v1152 = vadd.f32 %v1120, %v773
      %v1153 = vadd.f32 %v1121, %v776
      %v1154 = vadd.f32 %v1122, %v779
      %v1155 = vadd.f32 %v1123, %v782
      %v1156 = vadd.f32 %v1124, %v785
      %v1157 = vadd.f32 %v1125, %v788
      %v1158 = vadd.f32 %v1126, %v791
      %v1159 = vadd.f32 %v1127, %v794
      %v1160 = vadd.f32 %v1128, %v797
      %v1161 = vadd.f32 %v1129, %v800
      %v1162 = vadd.f32 %v1130, %v803
      %v1163 = vadd.f32 %v1131, %v806
      %v1164 = vadd.f32 %v1132, %v809
      %v1165 = vadd.f32 %v1133, %v812
      %v1166 = vadd.f32 %v1134, %v815
      %v1167 = vadd.f32 %v1135, %v818
      %v1168 = vadd.f32 %v1136, %v821
      %v1169 = vadd.f32 %v1137, %v824
      %v1170 = vadd.f32 %v1138, %v827
      %v1171 = vadd.f32 %v1139, %v830
      %v1172 = vadd.f32 %v1140, %v833
      %v1173 = vadd.f32 %v1141, %v836
      %v1174 = vadd.f32 %v1142, %v839
      %v1175 = vadd.f32 %v1143, %v842
      %v1176 = vadd.f32 %v1144, %v845
      %v1177 = vadd.f32 %v1145, %v848
      %v1178 = vadd.f32 %v1146, %v851
      %v1179 = vadd.f32 %v1147, %v854
      %v1180 = vadd.f32 %v1148, %v857
      %v1181 = vadd.f32 %v1149, %v860
      %vm1182 = vcmask 130048
      %1183 = vst.msk [vmem:[%s344] sm:$0xff] %vm1182, %v1150
      %1184 = vst.msk [vmem:[%s344 + $0x8] sm:$0xff] %vm1182, %v1151
      %1185 = vst.msk [vmem:[%s344 + $0x10] sm:$0xff] %vm1182, %v1152
      %1186 = vst.msk [vmem:[%s344 + $0x18] sm:$0xff] %vm1182, %v1153
      %1187 = vst.msk [vmem:[%s344 + $0x20] sm:$0xff] %vm1182, %v1154
      %1188 = vst.msk [vmem:[%s344 + $0x28] sm:$0xff] %vm1182, %v1155
      %1189 = vst.msk [vmem:[%s344 + $0x30] sm:$0xff] %vm1182, %v1156
      %1190 = vst.msk [vmem:[%s344 + $0x38] sm:$0xff] %vm1182, %v1157
      %1191 = vst.msk [vmem:[%s344 + $0x40] sm:$0xff] %vm1182, %v1158
      %1192 = vst.msk [vmem:[%s344 + $0x48] sm:$0xff] %vm1182, %v1159
      %1193 = vst.msk [vmem:[%s344 + $0x50] sm:$0xff] %vm1182, %v1160
      %1194 = vst.msk [vmem:[%s344 + $0x58] sm:$0xff] %vm1182, %v1161
      %1195 = vst.msk [vmem:[%s344 + $0x60] sm:$0xff] %vm1182, %v1162
      %1196 = vst.msk [vmem:[%s344 + $0x68] sm:$0xff] %vm1182, %v1163
      %1197 = vst.msk [vmem:[%s344 + $0x70] sm:$0xff] %vm1182, %v1164
      %1198 = vst.msk [vmem:[%s344 + $0x78] sm:$0xff] %vm1182, %v1165
      %1199 = vst.msk [vmem:[%s344 + $0x80] sm:$0xff] %vm1182, %v1166
      %1200 = vst.msk [vmem:[%s344 + $0x88] sm:$0xff] %vm1182, %v1167
      %1201 = vst.msk [vmem:[%s344 + $0x90] sm:$0xff] %vm1182, %v1168
      %1202 = vst.msk [vmem:[%s344 + $0x98] sm:$0xff] %vm1182, %v1169
      %1203 = vst.msk [vmem:[%s344 + $0xa0] sm:$0xff] %vm1182, %v1170
      %1204 = vst.msk [vmem:[%s344 + $0xa8] sm:$0xff] %vm1182, %v1171
      %1205 = vst.msk [vmem:[%s344 + $0xb0] sm:$0xff] %vm1182, %v1172
      %1206 = vst.msk [vmem:[%s344 + $0xb8] sm:$0xff] %vm1182, %v1173
      %1207 = vst.msk [vmem:[%s344 + $0xc0] sm:$0xff] %vm1182, %v1174
      %1208 = vst.msk [vmem:[%s344 + $0xc8] sm:$0xff] %vm1182, %v1175
      %1209 = vst.msk [vmem:[%s344 + $0xd0] sm:$0xff] %vm1182, %v1176
      %1210 = vst.msk [vmem:[%s344 + $0xd8] sm:$0xff] %vm1182, %v1177
      %1211 = vst.msk [vmem:[%s344 + $0xe0] sm:$0xff] %vm1182, %v1178
      %1212 = vst.msk [vmem:[%s344 + $0xe8] sm:$0xff] %vm1182, %v1179
      %1213 = vst.msk [vmem:[%s344 + $0xf0] sm:$0xff] %vm1182, %v1180
      %1214 = vst.msk [vmem:[%s344 + $0xf8] sm:$0xff] %vm1182, %v1181
      %1215 = vst.msk [vmem:[%s350] sm:$0xff] %vm1182, %v767
      %1216 = vst.msk [vmem:[%s350 + $0x8] sm:$0xff] %vm1182, %v770
      %1217 = vst.msk [vmem:[%s350 + $0x10] sm:$0xff] %vm1182, %v773
      %1218 = vst.msk [vmem:[%s350 + $0x18] sm:$0xff] %vm1182, %v776
      %1219 = vst.msk [vmem:[%s350 + $0x20] sm:$0xff] %vm1182, %v779
      %1220 = vst.msk [vmem:[%s350 + $0x28] sm:$0xff] %vm1182, %v782
      %1221 = vst.msk [vmem:[%s350 + $0x30] sm:$0xff] %vm1182, %v785
      %1222 = vst.msk [vmem:[%s350 + $0x38] sm:$0xff] %vm1182, %v788
      %1223 = vst.msk [vmem:[%s350 + $0x40] sm:$0xff] %vm1182, %v791
      %1224 = vst.msk [vmem:[%s350 + $0x48] sm:$0xff] %vm1182, %v794
      %1225 = vst.msk [vmem:[%s350 + $0x50] sm:$0xff] %vm1182, %v797
      %1226 = vst.msk [vmem:[%s350 + $0x58] sm:$0xff] %vm1182, %v800
      %1227 = vst.msk [vmem:[%s350 + $0x60] sm:$0xff] %vm1182, %v803
      %1228 = vst.msk [vmem:[%s350 + $0x68] sm:$0xff] %vm1182, %v806
      %1229 = vst.msk [vmem:[%s350 + $0x70] sm:$0xff] %vm1182, %v809
      %1230 = vst.msk [vmem:[%s350 + $0x78] sm:$0xff] %vm1182, %v812
      %1231 = vst.msk [vmem:[%s350 + $0x80] sm:$0xff] %vm1182, %v815
      %1232 = vst.msk [vmem:[%s350 + $0x88] sm:$0xff] %vm1182, %v818
      %1233 = vst.msk [vmem:[%s350 + $0x90] sm:$0xff] %vm1182, %v821
      %1234 = vst.msk [vmem:[%s350 + $0x98] sm:$0xff] %vm1182, %v824
      %1235 = vst.msk [vmem:[%s350 + $0xa0] sm:$0xff] %vm1182, %v827
      %1236 = vst.msk [vmem:[%s350 + $0xa8] sm:$0xff] %vm1182, %v830
      %1237 = vst.msk [vmem:[%s350 + $0xb0] sm:$0xff] %vm1182, %v833
      %1238 = vst.msk [vmem:[%s350 + $0xb8] sm:$0xff] %vm1182, %v836
      %1239 = vst.msk [vmem:[%s350 + $0xc0] sm:$0xff] %vm1182, %v839
      %1240 = vst.msk [vmem:[%s350 + $0xc8] sm:$0xff] %vm1182, %v842
      %1241 = vst.msk [vmem:[%s350 + $0xd0] sm:$0xff] %vm1182, %v845
      %1242 = vst.msk [vmem:[%s350 + $0xd8] sm:$0xff] %vm1182, %v848
      %1243 = vst.msk [vmem:[%s350 + $0xe0] sm:$0xff] %vm1182, %v851
      %1244 = vst.msk [vmem:[%s350 + $0xe8] sm:$0xff] %vm1182, %v854
      %1245 = vst.msk [vmem:[%s350 + $0xf0] sm:$0xff] %vm1182, %v857
      %1246 = vst.msk [vmem:[%s350 + $0xf8] sm:$0xff] %vm1182, %v860
      %1279 = vrot.lane.b32.xlu0 %v767, 112
      %v1280 = vpop.permute.xlu0 %1279
      %1281 = vrot.lane.b32.xlu0 %v770, 112
      %v1282 = vpop.permute.xlu0 %1281
      %1283 = vrot.lane.b32.xlu0 %v773, 112
      %v1284 = vpop.permute.xlu0 %1283
      %1285 = vrot.lane.b32.xlu0 %v776, 112
      %v1286 = vpop.permute.xlu0 %1285
      %1287 = vrot.lane.b32.xlu0 %v779, 112
      %v1288 = vpop.permute.xlu0 %1287
      %1289 = vrot.lane.b32.xlu0 %v782, 112
      %v1290 = vpop.permute.xlu0 %1289
      %1291 = vrot.lane.b32.xlu0 %v785, 112
      %v1292 = vpop.permute.xlu0 %1291
      %1293 = vrot.lane.b32.xlu0 %v788, 112
      %v1294 = vpop.permute.xlu0 %1293
      %1295 = vrot.lane.b32.xlu0 %v791, 112
      %v1296 = vpop.permute.xlu0 %1295
      %1297 = vrot.lane.b32.xlu0 %v794, 112
      %v1298 = vpop.permute.xlu0 %1297
      %1299 = vrot.lane.b32.xlu0 %v797, 112
      %v1300 = vpop.permute.xlu0 %1299
      %1301 = vrot.lane.b32.xlu0 %v800, 112
      %v1302 = vpop.permute.xlu0 %1301
      %1303 = vrot.lane.b32.xlu0 %v803, 112
      %v1304 = vpop.permute.xlu0 %1303
      %1305 = vrot.lane.b32.xlu0 %v806, 112
      %v1306 = vpop.permute.xlu0 %1305
      %1307 = vrot.lane.b32.xlu0 %v809, 112
      %v1308 = vpop.permute.xlu0 %1307
      %1309 = vrot.lane.b32.xlu0 %v812, 112
      %v1310 = vpop.permute.xlu0 %1309
      %1311 = vrot.lane.b32.xlu0 %v815, 112
      %v1312 = vpop.permute.xlu0 %1311
      %1313 = vrot.lane.b32.xlu0 %v818, 112
      %v1314 = vpop.permute.xlu0 %1313
      %1315 = vrot.lane.b32.xlu0 %v821, 112
      %v1316 = vpop.permute.xlu0 %1315
      %1317 = vrot.lane.b32.xlu0 %v824, 112
      %v1318 = vpop.permute.xlu0 %1317
      %1319 = vrot.lane.b32.xlu0 %v827, 112
      %v1320 = vpop.permute.xlu0 %1319
      %1321 = vrot.lane.b32.xlu0 %v830, 112
      %v1322 = vpop.permute.xlu0 %1321
      %1323 = vrot.lane.b32.xlu0 %v833, 112
      %v1324 = vpop.permute.xlu0 %1323
      %1325 = vrot.lane.b32.xlu0 %v836, 112
      %v1326 = vpop.permute.xlu0 %1325
      %1327 = vrot.lane.b32.xlu0 %v839, 112
      %v1328 = vpop.permute.xlu0 %1327
      %1329 = vrot.lane.b32.xlu0 %v842, 112
      %v1330 = vpop.permute.xlu0 %1329
      %1331 = vrot.lane.b32.xlu0 %v845, 112
      %v1332 = vpop.permute.xlu0 %1331
      %1333 = vrot.lane.b32.xlu0 %v848, 112
      %v1334 = vpop.permute.xlu0 %1333
      %1335 = vrot.lane.b32.xlu0 %v851, 112
      %v1336 = vpop.permute.xlu0 %1335
      %1337 = vrot.lane.b32.xlu0 %v854, 112
      %v1338 = vpop.permute.xlu0 %1337
      %1339 = vrot.lane.b32.xlu0 %v857, 112
      %v1340 = vpop.permute.xlu0 %1339
      %1341 = vrot.lane.b32.xlu0 %v860, 112
      %v1342 = vpop.permute.xlu0 %1341
      %1375 = vst.msk [vmem:[%s356] sm:$0xff] %vm1182, %v1280
      %1376 = vst.msk [vmem:[%s356 + $0x8] sm:$0xff] %vm1182, %v1282
      %1377 = vst.msk [vmem:[%s356 + $0x10] sm:$0xff] %vm1182, %v1284
      %1378 = vst.msk [vmem:[%s356 + $0x18] sm:$0xff] %vm1182, %v1286
      %1379 = vst.msk [vmem:[%s356 + $0x20] sm:$0xff] %vm1182, %v1288
      %1380 = vst.msk [vmem:[%s356 + $0x28] sm:$0xff] %vm1182, %v1290
      %1381 = vst.msk [vmem:[%s356 + $0x30] sm:$0xff] %vm1182, %v1292
      %1382 = vst.msk [vmem:[%s356 + $0x38] sm:$0xff] %vm1182, %v1294
      %1383 = vst.msk [vmem:[%s356 + $0x40] sm:$0xff] %vm1182, %v1296
      %1384 = vst.msk [vmem:[%s356 + $0x48] sm:$0xff] %vm1182, %v1298
      %1385 = vst.msk [vmem:[%s356 + $0x50] sm:$0xff] %vm1182, %v1300
      %1386 = vst.msk [vmem:[%s356 + $0x58] sm:$0xff] %vm1182, %v1302
      %1387 = vst.msk [vmem:[%s356 + $0x60] sm:$0xff] %vm1182, %v1304
      %1388 = vst.msk [vmem:[%s356 + $0x68] sm:$0xff] %vm1182, %v1306
      %1389 = vst.msk [vmem:[%s356 + $0x70] sm:$0xff] %vm1182, %v1308
      %1390 = vst.msk [vmem:[%s356 + $0x78] sm:$0xff] %vm1182, %v1310
      %1391 = vst.msk [vmem:[%s356 + $0x80] sm:$0xff] %vm1182, %v1312
      %1392 = vst.msk [vmem:[%s356 + $0x88] sm:$0xff] %vm1182, %v1314
      %1393 = vst.msk [vmem:[%s356 + $0x90] sm:$0xff] %vm1182, %v1316
      %1394 = vst.msk [vmem:[%s356 + $0x98] sm:$0xff] %vm1182, %v1318
      %1395 = vst.msk [vmem:[%s356 + $0xa0] sm:$0xff] %vm1182, %v1320
      %1396 = vst.msk [vmem:[%s356 + $0xa8] sm:$0xff] %vm1182, %v1322
      %1397 = vst.msk [vmem:[%s356 + $0xb0] sm:$0xff] %vm1182, %v1324
      %1398 = vst.msk [vmem:[%s356 + $0xb8] sm:$0xff] %vm1182, %v1326
      %1399 = vst.msk [vmem:[%s356 + $0xc0] sm:$0xff] %vm1182, %v1328
      %1400 = vst.msk [vmem:[%s356 + $0xc8] sm:$0xff] %vm1182, %v1330
      %1401 = vst.msk [vmem:[%s356 + $0xd0] sm:$0xff] %vm1182, %v1332
      %1402 = vst.msk [vmem:[%s356 + $0xd8] sm:$0xff] %vm1182, %v1334
      %1403 = vst.msk [vmem:[%s356 + $0xe0] sm:$0xff] %vm1182, %v1336
      %1404 = vst.msk [vmem:[%s356 + $0xe8] sm:$0xff] %vm1182, %v1338
      %1405 = vst.msk [vmem:[%s356 + $0xf0] sm:$0xff] %vm1182, %v1340
      %1406 = vst.msk [vmem:[%s356 + $0xf8] sm:$0xff] %vm1182, %v1342
      %s1407 = smul.u32 32, %s20
      %p1408 = scmp.lt.s32.totalorder %s1407, 63
      %s1409 = scalar_select %p1408, %s1407, 63
      %s1410 = smul.addr %s1409, 8
      %s1411 = scalar_lea.vmem %s6, %s1410
      %s1412 = smul.u32 32, %s20
      %p1413 = scmp.lt.s32.totalorder %s1412, 63
      %s1414 = scalar_select %p1413, %s1412, 63
      %s1415 = smul.addr %s1414, 8
      %s1416 = scalar_lea.vmem %s7, %s1415
      %s1417 = smul.u32 32, %s20
      %p1418 = scmp.lt.s32.totalorder %s1417, 63
      %s1419 = scalar_select %p1418, %s1417, 63
      %s1420 = smul.addr %s1419, 8
      %s1421 = scalar_lea.vmem %s8, %s1420
      // Predicated region
      $region45: #{tpu_custom_call.1} parent=43 // pred_check
        %p1422 = pneg %p174
      $region46: #{tpu_custom_call.1} parent=43 // pred_check_branch
        %1424 = sbr.rel (%p1422) target = $region48
      $region47: #{tpu_custom_call.1} parent=43 // pred_region
        %s1425 = smul.u32 32, %s20
      $region48: #{tpu_custom_call.1} parent=43 // pred_fallthru
        _
      // Predicated region
      $region49: #{tpu_custom_call.1} parent=43 // pred_check
        %p1426 = pneg %p200
      $region50: #{tpu_custom_call.1} parent=43 // pred_check_branch
        %1428 = sbr.rel (%p1426) target = $region52
      $region51: #{tpu_custom_call.1} parent=43 // pred_region
        %s1429 = smul.u32 32, %s20
      $region52: #{tpu_custom_call.1} parent=43 // pred_fallthru
        _
      // Predicated region
      $region53: #{tpu_custom_call.1} parent=43 // pred_check
        %p1430 = pneg %p226
      $region54: #{tpu_custom_call.1} parent=43 // pred_check_branch
        %1432 = sbr.rel (%p1430) target = $region56
      $region55: #{tpu_custom_call.1} parent=43 // pred_region
        %s1433 = smul.u32 32, %s20
      $region56: #{tpu_custom_call.1} parent=43 // pred_fallthru
        _
    $region44: #{tpu_custom_call.1} parent=5 // pred_fallthru
      _
    %p1434 = scmp.le.s32.totalorder 2, %s15
    // Predicated region
    $region57: #{tpu_custom_call.1} parent=5 // pred_check
      %p1435 = pneg %p1434
    $region58: #{tpu_custom_call.1} parent=5 // pred_check_branch
      %1437 = sbr.rel (%p1435) target = $region60
    $region59: #{tpu_custom_call.1} parent=5 // pred_region
      %s1438 = ssub.s32 %s15, 2
      // Predicated region
      $region61: #{tpu_custom_call.1} parent=59 // pred_check
        %p1439 = pneg %p180
      $region62: #{tpu_custom_call.1} parent=59 // pred_check_branch
        %1441 = sbr.rel (%p1439) target = $region64
      $region63: #{tpu_custom_call.1} parent=59 // pred_region
        %s1442 = smul.u32 32, %s21
        %p1443 = scmp.lt.s32.totalorder %s1442, 63
        %s1444 = scalar_select %p1443, %s1442, 63
        %s1445 = smul.addr %s1444, 8
        %s1446 = scalar_lea.vmem %s6, %s1445
      $region64: #{tpu_custom_call.1} parent=59 // pred_fallthru
        _
      // Predicated region
      $region65: #{tpu_custom_call.1} parent=59 // pred_check
        %p1447 = pneg %p206
      $region66: #{tpu_custom_call.1} parent=59 // pred_check_branch
        %1449 = sbr.rel (%p1447) target = $region68
      $region67: #{tpu_custom_call.1} parent=59 // pred_region
        %s1450 = smul.u32 32, %s21
        %p1451 = scmp.lt.s32.totalorder %s1450, 63
        %s1452 = scalar_select %p1451, %s1450, 63
        %s1453 = smul.addr %s1452, 8
        %s1454 = scalar_lea.vmem %s7, %s1453
      $region68: #{tpu_custom_call.1} parent=59 // pred_fallthru
        _
      // Predicated region
      $region69: #{tpu_custom_call.1} parent=59 // pred_check
        %p1455 = pneg %p232
      $region70: #{tpu_custom_call.1} parent=59 // pred_check_branch
        %1457 = sbr.rel (%p1455) target = $region72
      $region71: #{tpu_custom_call.1} parent=59 // pred_region
        %s1458 = smul.u32 32, %s21
        %p1459 = scmp.lt.s32.totalorder %s1458, 63
        %s1460 = scalar_select %p1459, %s1458, 63
        %s1461 = smul.addr %s1460, 8
        %s1462 = scalar_lea.vmem %s8, %s1461
      $region72: #{tpu_custom_call.1} parent=59 // pred_fallthru
        _
    $region60: #{tpu_custom_call.1} parent=5 // pred_fallthru
      _
  $region6: #{tpu_custom_call.1} parent=0 // loop_footer
    %s19 = sadd.s32 1, %s15
  $region7: #{tpu_custom_call.1} parent=0 // loop_footer_branch
    %14 = sbr.rel target = $region3
  $region8: #{tpu_custom_call.1} parent=0 // loop_exit
    _

</llo_original>
